<compile_context>
chip_gen: v7x
topology: tpu7x:2x2x1
jax: 0.10.0
libtpu: 0.0.40
codegen_flags: <defaults>
</compile_context>

<pallas_src>
import jax
import jax.numpy as jnp
from jax.experimental import pallas as pl
from jax.experimental.pallas import tpu as pltpu

# ------------------------- model / problem sizes -------------------------
B = 2                 # batch
H = 8                 # horizon (sequence length)
OBS_DIM = 8           # full feature width of x
TRANSITION_DIM = 6    # model.transition_dim (slice target)
TIME_DIM = 16         # timestep-embedding width
HIDDEN = 32           # MLP hidden width
NUM_TIMESTEPS = 100   # diffusion timesteps (embedding table rows)


# ----------------------------- Pallas kernel -----------------------------
def value_kernel(x_ref, t_ref, w1x_ref, embw1_ref, b1_ref, w2r_ref, b2_ref, out_ref):
    # x_ref   : [B, H*OBS_DIM] f32 (VMEM)   t_ref : [B, 1] int32 (VMEM)
    # w1x_ref : [H*OBS_DIM, HIDDEN]          embw1_ref : [NUM_TIMESTEPS, HIDDEN]
    # b1_ref  : [1, HIDDEN]                  w2r_ref   : [1, HIDDEN]
    # b2_ref  : [1] f32 (SMEM scalar)        out_ref   : [B, 1]

    # ---- layer 1, x path: fused slice (zero-padded weights) + flatten + MXU matmul.
    h = jnp.dot(x_ref[...], w1x_ref[...], preferred_element_type=jnp.float32)

    # ---- layer 1, time path: fused embedding gather as a one-hot matmul against the
    #      pre-folded table emb_w1 = time_emb @ w1_t   (gather of rows is exact).
    tids = t_ref[...]                                                     # [B, 1] int32
    steps = jax.lax.broadcasted_iota(
        jnp.int32, (tids.shape[0], embw1_ref.shape[0]), 1)                # [B, T]
    onehot = (steps == tids).astype(jnp.float32)                          # [B, T]
    h = h + jnp.dot(onehot, embw1_ref[...], preferred_element_type=jnp.float32)
    h = h + b1_ref[...]

    # ---- Mish via a single exp + approximate EUP reciprocal:
    #      mish(x) = x * tanh(softplus(x)) = x * (1 - 2 / ((1 + e^x)^2 + 1))
    #      clamp: for x > 20, mish(x) == x to f32 precision, so the clamp is exact.
    e = jnp.exp(jnp.minimum(h, 20.0))
    u = e + 1.0
    h = h * (1.0 - 2.0 * pl.reciprocal(u * u + 1.0, approx=True))

    # ---- layer 2 (N=1): VPU multiply + XLU lane reduction (skip the MXU round trip).
    y = jnp.sum(h * w2r_ref[...], axis=-1, keepdims=True) + b2_ref[0]     # [B, 1]
    out_ref[...] = y.astype(out_ref.dtype)


_VMEM = pl.BlockSpec(memory_space=pltpu.MemorySpace.VMEM)
_SMEM = pl.BlockSpec(memory_space=pltpu.MemorySpace.SMEM)


def value_model_pallas(x2d, t2d, w1x_pad, emb_w1, b1, w2_row, b2):
    # Single grid-less invocation: everything fits trivially in VMEM, so no grid /
    # pipelining machinery (which would only add per-step overhead at this size).
    return pl.pallas_call(
        value_kernel,
        out_shape=jax.ShapeDtypeStruct((x2d.shape[0], 1), jnp.float32),
        in_specs=[_VMEM, _VMEM, _VMEM, _VMEM, _VMEM, _VMEM, _SMEM],
        out_specs=_VMEM,
    )(x2d, t2d, w1x_pad, emb_w1, b1, w2_row, b2)


# --------------------------- parameter init -------------------------------
def init_params(key):
    k1, k2, k3 = jax.random.split(key, 3)
    d_in = H * TRANSITION_DIM + TIME_DIM
    return dict(
        w1=jax.random.normal(k1, (d_in, HIDDEN), jnp.float32) * 0.1,
        b1=jnp.zeros((1, HIDDEN), jnp.float32),
        w2=jax.random.normal(k2, (HIDDEN, 1), jnp.float32) * 0.1,
        b2=jnp.zeros((1, 1), jnp.float32),
        time_emb=jax.random.normal(k3, (NUM_TIMESTEPS, TIME_DIM), jnp.float32) * 0.1,
    )


def prepare_params(params):
    """One-time weight repack so the per-call path needs no slice/gather/concat glue.

    * w1 is split at H*TRANSITION_DIM:
        - x-part is reshaped to [H, TRANSITION_DIM, HIDDEN] and zero-padded along the
          feature axis to [H, OBS_DIM, HIDDEN]: consuming the UNsliced x against these
          weights is exactly equivalent to the x[:, :, :TRANSITION_DIM] slice.
        - time-part is folded through the embedding table:
          emb_w1[t] == time_emb[t] @ w1[H*T:]  (row gather commutes with the matmul).
    * w2 is stored as a [1, HIDDEN] row for the in-kernel VPU reduction.
    """
    ht = H * TRANSITION_DIM
    w1x = params["w1"][:ht].reshape(H, TRANSITION_DIM, HIDDEN)
    w1x_pad = jnp.zeros((H, OBS_DIM, HIDDEN), jnp.float32)
    w1x_pad = w1x_pad.at[:, :TRANSITION_DIM, :].set(w1x).reshape(H * OBS_DIM, HIDDEN)
    emb_w1 = params["time_emb"] @ params["w1"][ht:]
    return dict(
        w1x_pad=w1x_pad,
        emb_w1=emb_w1,
        b1=params["b1"],
        w2_row=params["w2"].reshape(1, HIDDEN),
        b2=params["b2"].reshape(1),
    )


# --------------------------- ValueGuide.forward ---------------------------
def value_guide_forward(prep, x, cond, t):
    """Mirror of ValueGuide.forward: model(x[:, :, :transition_dim], cond, t).squeeze(-1)."""
    del cond  # accepted for signature parity; diffuser's value net ignores it
    bsz = x.shape[0]
    x2d = x.reshape(bsz, H * OBS_DIM)            # free bitcast; slice folded into w1x_pad
    t2d = t.astype(jnp.int32).reshape(bsz, 1)    # timesteps, gathered inside the kernel
    out = value_model_pallas(x2d, t2d, prep["w1x_pad"], prep["emb_w1"],
                             prep["b1"], prep["w2_row"], prep["b2"])      # [B, 1]
    return out[:, 0]                             # .squeeze(dim=-1) -> [B]
    # TODO(synk): ValueGuide.gradients (torch.autograd.grad through the value) would
    # need a custom_vjp around the pallas_call; only the forward pass is implemented.


# ------------------------------ reference --------------------------------
def value_guide_ref(params, x, cond, t):
    """Pure-JAX mirror of the original PyTorch forward (exact Mish)."""
    del cond
    x_flat = x[:, :, 0:TRANSITION_DIM].reshape(x.shape[0], -1)
    feat = jnp.concatenate([x_flat, params["time_emb"][t]], axis=-1)
    h = feat @ params["w1"] + params["b1"]
    h = h * jnp.tanh(jax.nn.softplus(h))
    y = h @ params["w2"] + params["b2"]
    return jnp.squeeze(y, axis=-1)


if __name__ == "__main__":
    key = jax.random.PRNGKey(0)
    kp, kx, kt = jax.random.split(key, 3)

    params = init_params(kp)
    prep = prepare_params(params)

    x = jax.random.normal(kx, (B, H, OBS_DIM), jnp.float32)     # candidate trajectories
    t = jax.random.randint(kt, (B,), 0, NUM_TIMESTEPS)          # diffusion timesteps
    cond = {}                                                   # conditioning dict (unused)

    fwd = jax.jit(value_guide_forward)
    y = jax.block_until_ready(fwd(prep, x, cond, t))

    y_ref = value_guide_ref(params, x, cond, t)
    assert y.shape == (B,), y.shape
    # Tolerance loosened (per review note) because the kernel uses the approximate
    # EUP reciprocal in the Mish rewrite; expected deviation is O(1e-3) or less.
    assert jnp.allclose(y, y_ref, atol=2e-2, rtol=2e-2), (y, y_ref)

    print("KERNEL_OK")
</pallas_src>

<mosaic_0001>
module attributes {stable_mosaic.version = 11 : i64} {
  func.func @value_kernel(%arg0: memref<2x64xf32, #tpu.memory_space<vmem>>, %arg1: memref<2x1xi32, #tpu.memory_space<vmem>>, %arg2: memref<64x32xf32, #tpu.memory_space<vmem>>, %arg3: memref<100x32xf32, #tpu.memory_space<vmem>>, %arg4: memref<1x32xf32, #tpu.memory_space<vmem>>, %arg5: memref<1x32xf32, #tpu.memory_space<vmem>>, %arg6: memref<1xf32, #tpu.memory_space<smem>>, %arg7: memref<2x1xf32, #tpu.memory_space<vmem>>) attributes {dimension_semantics = [], scalar_prefetch = 0 : i64, scratch_operands = 0 : i64, tpu.core_type = #tpu.core_type<tc>} {
    %c0 = arith.constant 0 : index
    %c0_0 = arith.constant 0 : index
    %0 = vector.load %arg0[%c0, %c0_0] : memref<2x64xf32, #tpu.memory_space<vmem>>, vector<2x64xf32>
    %c0_1 = arith.constant 0 : index
    %c0_2 = arith.constant 0 : index
    %1 = vector.load %arg2[%c0_1, %c0_2] : memref<64x32xf32, #tpu.memory_space<vmem>>, vector<64x32xf32>
    %cst = arith.constant dense<0.000000e+00> : vector<2x32xf32>
    %2 = tpu.matmul %0, %1, %cst {dimension_numbers = #tpu.dot_dimension_numbers<[1], [0], [0], [1], [0, 0, 1, 1], [], []>} : vector<2x64xf32>, vector<64x32xf32>, vector<2x32xf32> -> vector<2x32xf32>
    %c0_3 = arith.constant 0 : index
    %c0_4 = arith.constant 0 : index
    %3 = vector.load %arg1[%c0_3, %c0_4] : memref<2x1xi32, #tpu.memory_space<vmem>>, vector<2x1xi32>
    %4 = tpu.iota {dimensions = array<i32: 1>} : vector<2x100xi32>
    %5 = vector.broadcast %3 : vector<2x1xi32> to vector<2x100xi32>
    %6 = arith.cmpi eq, %4, %5 : vector<2x100xi32>
    %7 = arith.extui %6 : vector<2x100xi1> to vector<2x100xi32>
    %8 = arith.sitofp %7 : vector<2x100xi32> to vector<2x100xf32>
    %c0_5 = arith.constant 0 : index
    %c0_6 = arith.constant 0 : index
    %9 = vector.load %arg3[%c0_5, %c0_6] : memref<100x32xf32, #tpu.memory_space<vmem>>, vector<100x32xf32>
    %cst_7 = arith.constant dense<0.000000e+00> : vector<2x32xf32>
    %10 = tpu.matmul %8, %9, %cst_7 {dimension_numbers = #tpu.dot_dimension_numbers<[1], [0], [0], [1], [0, 0, 1, 1], [], []>} : vector<2x100xf32>, vector<100x32xf32>, vector<2x32xf32> -> vector<2x32xf32>
    %11 = arith.addf %2, %10 : vector<2x32xf32>
    %c0_8 = arith.constant 0 : index
    %c0_9 = arith.constant 0 : index
    %12 = vector.load %arg4[%c0_8, %c0_9] : memref<1x32xf32, #tpu.memory_space<vmem>>, vector<1x32xf32>
    %13 = vector.broadcast %12 : vector<1x32xf32> to vector<2x32xf32>
    %14 = arith.addf %11, %13 : vector<2x32xf32>
    %cst_10 = arith.constant 2.000000e+01 : f32
    %15 = vector.broadcast %cst_10 : f32 to vector<2x32xf32>
    %16 = arith.minimumf %14, %15 : vector<2x32xf32>
    %17 = math.exp %16 : vector<2x32xf32>
    %cst_11 = arith.constant 1.000000e+00 : f32
    %18 = vector.broadcast %cst_11 : f32 to vector<2x32xf32>
    %19 = arith.addf %17, %18 : vector<2x32xf32>
    %20 = arith.mulf %19, %19 : vector<2x32xf32>
    %cst_12 = arith.constant 1.000000e+00 : f32
    %21 = vector.broadcast %cst_12 : f32 to vector<2x32xf32>
    %22 = arith.addf %20, %21 : vector<2x32xf32>
    %23 = tpu.reciprocal %22 {approx = true} : vector<2x32xf32> -> vector<2x32xf32>
    %cst_13 = arith.constant 2.000000e+00 : f32
    %24 = vector.broadcast %cst_13 : f32 to vector<2x32xf32>
    %25 = arith.mulf %24, %23 : vector<2x32xf32>
    %cst_14 = arith.constant 1.000000e+00 : f32
    %26 = vector.broadcast %cst_14 : f32 to vector<2x32xf32>
    %27 = arith.subf %26, %25 : vector<2x32xf32>
    %28 = arith.mulf %14, %27 : vector<2x32xf32>
    %c0_15 = arith.constant 0 : index
    %c0_16 = arith.constant 0 : index
    %29 = vector.load %arg5[%c0_15, %c0_16] : memref<1x32xf32, #tpu.memory_space<vmem>>, vector<1x32xf32>
    %30 = vector.broadcast %29 : vector<1x32xf32> to vector<2x32xf32>
    %31 = arith.mulf %28, %30 : vector<2x32xf32>
    %cst_17 = arith.constant dense<0.000000e+00> : vector<2xf32>
    %32 = vector.multi_reduction <add>, %31, %cst_17 [1] : vector<2x32xf32> to vector<2xf32>
    %33 = vector.shape_cast %32 : vector<2xf32> to vector<2x1xf32>
    %c0_18 = arith.constant 0 : index
    %34 = memref.load %arg6[%c0_18] : memref<1xf32, #tpu.memory_space<smem>>
    %35 = vector.broadcast %34 : f32 to vector<2x1xf32>
    %36 = arith.addf %33, %35 : vector<2x1xf32>
    %c0_19 = arith.constant 0 : index
    %c0_20 = arith.constant 0 : index
    %37 = vector.load %arg7[%c0_19, %c0_20] : memref<2x1xf32, #tpu.memory_space<vmem>>, vector<2x1xf32>
    tpu.vector_store %arg7[%c0_19, %c0_20], %36 {strides = array<i32>} : memref<2x1xf32, #tpu.memory_space<vmem>>, vector<2x1xf32>,
    return
  }
}

</mosaic_0001>

<llo_original>
// kernel: value_guide_forward.1
$region0: #{value_guide_forward.1}
  #allocation0 [shape = 'u32[]', space=smem, size = 0x4, offset = 0x4, fixed_abs, tag = 'smem constant byte address 0x4 - core index']
  #allocation1 [shape = 'u32[144,128]{1,0:T(1,128)}', space=vmem, size = 0x12000, scoped, tag = 'internal scratch']
  #allocation2 [shape = 'f32[1]{0:T(128)S(6)}', space=smem, size = 0x200, scoped, tag = 'scoped memory for value_guide_forward.1']
  %s0 = inlined_call_operand.vmem [shape: f32[2,64], index: 0, kind: input, shape index: {}]
  %s1 = inlined_call_operand.vmem [shape: s32[2,1], index: 1, kind: input, shape index: {}]
  %s2 = inlined_call_operand.vmem [shape: f32[64,32], index: 2, kind: input, shape index: {}]
  %s3 = inlined_call_operand.vmem [shape: f32[100,32], index: 3, kind: input, shape index: {}]
  %s4 = inlined_call_operand.vmem [shape: f32[1,32], index: 4, kind: input, shape index: {}]
  %s5 = inlined_call_operand.vmem [shape: f32[1,32], index: 5, kind: input, shape index: {}]
  %s6 = inlined_call_operand.<no memory space> [shape: f32[1], index: 6, kind: input, shape index: {}]
  %s7 = inlined_call_operand.vmem [shape: f32[2,1], index: 7, kind: output, shape index: {}]
  %s8 = sld [smem:[#allocation0]]
  $region38: #{value_guide_forward.1} parent=0
    _
  %s10 = ssub.s32 1, %s8
  %s11 = scalar_select 0, %s10, %s8
  %12 = sst [smem:[#allocation2]] %s6
  // Predicated region
  $region2: #{value_guide_forward.1} parent=0 // pred_check
    _
  $region3: #{value_guide_forward.1} parent=0 // pred_check_branch
    %14 = sbr.rel (0) target = $region5
  $region4: #{value_guide_forward.1} parent=0 // pred_region
    _
  $region5: #{value_guide_forward.1} parent=0 // pred_fallthru
    _
  // Predicated region
  $region6: #{value_guide_forward.1} parent=0 // pred_check
    _
  $region7: #{value_guide_forward.1} parent=0 // pred_check_branch
    %16 = sbr.rel (0) target = $region9
  $region8: #{value_guide_forward.1} parent=0 // pred_region
    _
  $region9: #{value_guide_forward.1} parent=0 // pred_fallthru
    _
  // Predicated region
  $region10: #{value_guide_forward.1} parent=0 // pred_check
    _
  $region11: #{value_guide_forward.1} parent=0 // pred_check_branch
    %18 = sbr.rel (0) target = $region13
  $region12: #{value_guide_forward.1} parent=0 // pred_region
    _
  $region13: #{value_guide_forward.1} parent=0 // pred_fallthru
    _
  // Predicated region
  $region14: #{value_guide_forward.1} parent=0 // pred_check
    _
  $region15: #{value_guide_forward.1} parent=0 // pred_check_branch
    %20 = sbr.rel (0) target = $region17
  $region16: #{value_guide_forward.1} parent=0 // pred_region
    _
  $region17: #{value_guide_forward.1} parent=0 // pred_fallthru
    _
  // Predicated region
  $region18: #{value_guide_forward.1} parent=0 // pred_check
    _
  $region19: #{value_guide_forward.1} parent=0 // pred_check_branch
    %22 = sbr.rel (0) target = $region21
  $region20: #{value_guide_forward.1} parent=0 // pred_region
    _
  $region21: #{value_guide_forward.1} parent=0 // pred_fallthru
    _
  // Predicated region
  $region22: #{value_guide_forward.1} parent=0 // pred_check
    _
  $region23: #{value_guide_forward.1} parent=0 // pred_check_branch
    %24 = sbr.rel (0) target = $region25
  $region24: #{value_guide_forward.1} parent=0 // pred_region
    _
  $region25: #{value_guide_forward.1} parent=0 // pred_fallthru
    _
  // Predicated region
  $region26: #{value_guide_forward.1} parent=0 // pred_check
    _
  $region27: #{value_guide_forward.1} parent=0 // pred_check_branch
    %26 = sbr.rel (0) target = $region29
  $region28: #{value_guide_forward.1} parent=0 // pred_region
    _
  $region29: #{value_guide_forward.1} parent=0 // pred_fallthru
    _
  %v27 = vld [vmem:[%s0] sm:$0x3]
  %v28 = vld [vmem:[%s2] sm:$0xff]
  %v29 = vld [vmem:[%s2 + $0x8] sm:$0xff]
  %v30 = vld [vmem:[%s2 + $0x10] sm:$0xff]
  %v31 = vld [vmem:[%s2 + $0x18] sm:$0xff]
  %v32 = vld [vmem:[%s2 + $0x20] sm:$0xff]
  %v33 = vld [vmem:[%s2 + $0x28] sm:$0xff]
  %v34 = vld [vmem:[%s2 + $0x30] sm:$0xff]
  %v35 = vld [vmem:[%s2 + $0x38] sm:$0xff]
  %v36 = vld [vmem:[%s1] sm:$0x3]
  %v37 = vlaneseq
  %v38 = vand.u32 %v37, 127
  %39 = vset.pattern.permute.xlu0 0
  %40 = vperm.xlu0 %39, %v36
  %v41 = vpop.permute.xlu0 %40
  %vm42 = vcmp.eq.s32.totalorder %v38, %v41
  %v43 = vsel %vm42, 1, 0
  %v44 = vcvt.s32.f32 %v43
  %v45 = vld [vmem:[%s3] sm:$0xff]
  %v46 = vld [vmem:[%s3 + $0x8] sm:$0xff]
  %v47 = vld [vmem:[%s3 + $0x10] sm:$0xff]
  %v48 = vld [vmem:[%s3 + $0x18] sm:$0xff]
  %v49 = vld [vmem:[%s3 + $0x20] sm:$0xff]
  %v50 = vld [vmem:[%s3 + $0x28] sm:$0xff]
  %v51 = vld [vmem:[%s3 + $0x30] sm:$0xff]
  %v52 = vld [vmem:[%s3 + $0x38] sm:$0xff]
  %v53 = vld [vmem:[%s3 + $0x40] sm:$0xff]
  %v54 = vld [vmem:[%s3 + $0x48] sm:$0xff]
  %v55 = vld [vmem:[%s3 + $0x50] sm:$0xff]
  %v56 = vld [vmem:[%s3 + $0x58] sm:$0xff]
  %v57 = vld [vmem:[%s3 + $0x60] sm:$0xf]
  %vm58 = vcmask 818176
  %v60 = vsel %vm58, %v44, 0
  %vm62 = vcmask 1043456
  %v64 = vsel %vm62, %v57, 0
  %66 = vmatprep.subr.mxu0 0.0
  %67 = vmatpush1.msra.mxu0 %v45
  %68 = vmatprep.subr.mxu0 0.0
  %69 = vmatpush1.msra.mxu0 %v46
  %70 = vmatprep.subr.mxu0 0.0
  %71 = vmatpush1.msra.mxu0 %v47
  %72 = vmatprep.subr.mxu0 0.0
  %73 = vmatpush1.msra.mxu0 %v48
  %74 = vmatprep.subr.mxu0 0.0
  %75 = vmatpush1.msra.mxu0 %v49
  %76 = vmatprep.subr.mxu0 0.0
  %77 = vmatpush1.msra.mxu0 %v50
  %78 = vmatprep.subr.mxu0 0.0
  %79 = vmatpush1.msra.mxu0 %v51
  %80 = vmatprep.subr.mxu0 0.0
  %81 = vmatpush1.msra.mxu0 %v52
  %82 = vmatprep.subr.mxu0 0.0
  %83 = vmatpush1.msra.mxu0 %v53
  %84 = vmatprep.subr.mxu0 0.0
  %85 = vmatpush1.msra.mxu0 %v54
  %86 = vmatprep.subr.mxu0 0.0
  %87 = vmatpush1.msra.mxu0 %v55
  %88 = vmatprep.subr.mxu0 0.0
  %89 = vmatpush1.msra.mxu0 %v56
  %90 = vmatprep.subr.mxu0 0.0
  %91 = vmatpush1.msra.mxu0 %v64
  %92 = vmatprep.subr.mxu0 0.0
  %93 = vmatpush1.msra.mxu0 0.0
  %94 = vmatprep.subr.mxu0 0.0
  %95 = vmatpush1.msra.mxu0 0.0
  %96 = vmatprep.subr.mxu0 0.0
  %97 = vmatpush1.msra.mxu0 0.0
  %98 = vmatprep.subr.mxu0 0.0
  %99 = vmatpush1.msra.mxu0 0.0
  %100 = vmatprep.subr.mxu0 0.0
  %101 = vmatpush1.msra.mxu0 0.0
  %102 = vmatprep.subr.mxu0 0.0
  %103 = vmatpush1.msra.mxu0 0.0
  %104 = vmatprep.subr.mxu0 0.0
  %105 = vmatpush1.msra.mxu0 0.0
  %106 = vmatprep.subr.mxu0 0.0
  %107 = vmatpush1.msra.mxu0 0.0
  %108 = vmatprep.subr.mxu0 0.0
  %109 = vmatpush1.msra.mxu0 0.0
  %110 = vmatprep.subr.mxu0 0.0
  %111 = vmatpush1.msra.mxu0 0.0
  %112 = vmatprep.subr.mxu0 0.0
  %113 = vmatpush1.msra.mxu0 0.0
  %114 = vmatprep.subr.mxu0 0.0
  %115 = vmatpush1.msra.mxu0 0.0
  %116 = vmatprep.subr.mxu0 0.0
  %117 = vmatpush1.msra.mxu0 0.0
  %118 = vmatprep.subr.mxu0 0.0
  %119 = vmatpush1.msra.mxu0 0.0
  %120 = vmatprep.subr.mxu0 0.0
  %121 = vmatpush1.msra.mxu0 0.0
  %122 = vmatprep.subr.mxu0 0.0
  %123 = vmatpush1.msra.mxu0 0.0
  %124 = vmatprep.subr.mxu0 0.0
  %125 = vmatpush1.msra.mxu0 0.0
  %126 = vmatprep.subr.mxu0 0.0
  %127 = vmatpush1.msra.mxu0 0.0
  %128 = vmatprep.subr.mxu0 0.0
  %129 = vmatpush1.msra.mxu0 0.0
  %130 = vmatprep.mubr.f32.mxu0 0.0
  %131 = vmatmul.mubr.f32.gmra.mrb[0].mxu0 %v60
  %v132 = vpop.f32.mrb[0].mxu0
  %v133 = vadd.f32 0.0, %v132
  %v134 = vpop.f32.mrb[0].mxu0
  %135 = vdwg.mxu0
  %vm136 = vcmask 523264
  %v138 = vsel %vm136, %v27, 0
  %140 = vmatprep.subr.mxu0 0.0
  %141 = vmatpush1.msra.mxu0 %v28
  %142 = vmatprep.subr.mxu0 0.0
  %143 = vmatpush1.msra.mxu0 %v29
  %144 = vmatprep.subr.mxu0 0.0
  %145 = vmatpush1.msra.mxu0 %v30
  %146 = vmatprep.subr.mxu0 0.0
  %147 = vmatpush1.msra.mxu0 %v31
  %148 = vmatprep.subr.mxu0 0.0
  %149 = vmatpush1.msra.mxu0 %v32
  %150 = vmatprep.subr.mxu0 0.0
  %151 = vmatpush1.msra.mxu0 %v33
  %152 = vmatprep.subr.mxu0 0.0
  %153 = vmatpush1.msra.mxu0 %v34
  %154 = vmatprep.subr.mxu0 0.0
  %155 = vmatpush1.msra.mxu0 %v35
  %156 = vmatprep.subr.mxu0 0.0
  %157 = vmatpush1.msra.mxu0 0.0
  %158 = vmatprep.subr.mxu0 0.0
  %159 = vmatpush1.msra.mxu0 0.0
  %160 = vmatprep.subr.mxu0 0.0
  %161 = vmatpush1.msra.mxu0 0.0
  %162 = vmatprep.subr.mxu0 0.0
  %163 = vmatpush1.msra.mxu0 0.0
  %164 = vmatprep.subr.mxu0 0.0
  %165 = vmatpush1.msra.mxu0 0.0
  %166 = vmatprep.subr.mxu0 0.0
  %167 = vmatpush1.msra.mxu0 0.0
  %168 = vmatprep.subr.mxu0 0.0
  %169 = vmatpush1.msra.mxu0 0.0
  %170 = vmatprep.subr.mxu0 0.0
  %171 = vmatpush1.msra.mxu0 0.0
  %172 = vmatprep.subr.mxu0 0.0
  %173 = vmatpush1.msra.mxu0 0.0
  %174 = vmatprep.subr.mxu0 0.0
  %175 = vmatpush1.msra.mxu0 0.0
  %176 = vmatprep.subr.mxu0 0.0
  %177 = vmatpush1.msra.mxu0 0.0
  %178 = vmatprep.subr.mxu0 0.0
  %179 = vmatpush1.msra.mxu0 0.0
  %180 = vmatprep.subr.mxu0 0.0
  %181 = vmatpush1.msra.mxu0 0.0
  %182 = vmatprep.subr.mxu0 0.0
  %183 = vmatpush1.msra.mxu0 0.0
  %184 = vmatprep.subr.mxu0 0.0
  %185 = vmatpush1.msra.mxu0 0.0
  %186 = vmatprep.subr.mxu0 0.0
  %187 = vmatpush1.msra.mxu0 0.0
  %188 = vmatprep.subr.mxu0 0.0
  %189 = vmatpush1.msra.mxu0 0.0
  %190 = vmatprep.subr.mxu0 0.0
  %191 = vmatpush1.msra.mxu0 0.0
  %192 = vmatprep.subr.mxu0 0.0
  %193 = vmatpush1.msra.mxu0 0.0
  %194 = vmatprep.subr.mxu0 0.0
  %195 = vmatpush1.msra.mxu0 0.0
  %196 = vmatprep.subr.mxu0 0.0
  %197 = vmatpush1.msra.mxu0 0.0
  %198 = vmatprep.subr.mxu0 0.0
  %199 = vmatpush1.msra.mxu0 0.0
  %200 = vmatprep.subr.mxu0 0.0
  %201 = vmatpush1.msra.mxu0 0.0
  %202 = vmatprep.subr.mxu0 0.0
  %203 = vmatpush1.msra.mxu0 0.0
  %204 = vmatprep.mubr.f32.mxu0 0.0
  %205 = vmatmul.mubr.f32.gmra.mrb[0].mxu0 %v138
  %v206 = vpop.f32.mrb[0].mxu0
  %v207 = vadd.f32 %v133, %v206
  %v208 = vpop.f32.mrb[0].mxu0
  %209 = vdwg.mxu0
  %v210 = vld [vmem:[%s4] sm:$0x1]
  %v212 = vlaneseq
  %v213 = vshrl.u32 %v212, 7
  %v214 = vsub.s32 0, %v213
  %v215 = vrot.slane %v210, %v214
  %v217 = vadd.f32 %v207, %v215
  %v218 = vmin.f32 %v217, 20.0
  %v219 = vmul.f32 %v218, 1.442695
  %v220 = vpow.pop %v219
  %v221 = vadd.f32 %v220, 1.0
  %v222 = vmul.f32 %v221, %v221
  %v223 = vadd.f32 %v222, 1.0
  %v224 = vrcp.pop %v223
  %v225 = vmul.f32 %v224, 2.0
  %v226 = vsub.f32 1.0, %v225
  %v227 = vmul.f32 %v217, %v226
  %v228 = vld [vmem:[%s5] sm:$0x1]
  %v230 = vlaneseq
  %v231 = vshrl.u32 %v230, 7
  %v232 = vsub.s32 0, %v231
  %v233 = vrot.slane %v228, %v232
  %v235 = vmul.f32 %v227, %v233
  %vm236 = vcmask 254976
  %v237 = vsel %vm236, %v235, 0.0
  %238 = vadd.xlane.f32.xlu0 %v237
  %v239 = vpop.xlane.xlu0 %238
  %s240 = sld [smem:[#allocation2]]
  %v241 = vstv %s240
  %v242 = vadd.f32 %v239, %v241
  %vm243 = vcmask 1024
  %244 = vst.msk [vmem:[%s7] sm:$0x3] %vm243, %v242
  // Predicated region
  $region30: #{value_guide_forward.1} parent=0 // pred_check
    _
  $region31: #{value_guide_forward.1} parent=0 // pred_check_branch
    %246 = sbr.rel (0) target = $region33
  $region32: #{value_guide_forward.1} parent=0 // pred_region
    _
  $region33: #{value_guide_forward.1} parent=0 // pred_fallthru
    _
  // Predicated region
  $region34: #{value_guide_forward.1} parent=0 // pred_check
    _
  $region35: #{value_guide_forward.1} parent=0 // pred_check_branch
    %248 = sbr.rel (0) target = $region37
  $region36: #{value_guide_forward.1} parent=0 // pred_region
    _
  $region37: #{value_guide_forward.1} parent=0 // pred_fallthru
    _

</llo_original>
